<compile_context>
chip_gen: v5e
topology: v5e:2x2
jax: 0.10.0
libtpu: 0.0.40
codegen_flags: <defaults>
</compile_context>

<pallas_src>
import jax
import jax.numpy as jnp
from jax.experimental import pallas as pl
from jax.experimental.pallas import tpu as pltpu


def _agg_tta_gemm_kernel(x_ref, w_ref, b_ref, o_ref):
    """grid = (B tiles [parallel], D tiles [reduction axis, last]).

    x_ref : VMEM (tb, td)   original (un-flipped) input rows, stored dtype
    w_ref : VMEM (td, Kp)   effective classifier tile (flips+weights folded)
    b_ref : VMEM (1,  Kp)   effective bias (already scaled by sum of TTA wts)
    o_ref : VMEM (tb, Kp)   f32 output tile, resident across the D axis
    """
    k = pl.program_id(1)

    @pl.when(k == 0)
    def _():
        # Initialize the resident output tile with the bias (added exactly once).
        o_ref[...] = jnp.broadcast_to(b_ref[...], o_ref.shape)

    # Cast x in-kernel (VPU cast hides under DMA); accumulate in f32 on the MXU.
    o_ref[...] += jnp.dot(
        x_ref[...].astype(w_ref.dtype), w_ref[...],
        preferred_element_type=jnp.float32,
    )


def _round_up(v, m):
    return ((v + m - 1) // m) * m


def agg_tta_forward(x, w_cls, b_cls, agg_logits, tta_idxs=None,
                    compute_dtype=jnp.bfloat16):
    """x: (B, C, H, W).  Returns aggregated logits (B, K) f32.

    compute_dtype controls the weight stream / MXU input precision (bf16 is the
    recommended default on v5e/v6e/v7x); accumulation is always f32.
    """
    B, C, H, W = x.shape
    D = C * H * W
    K = w_cls.shape[1]
    T = agg_logits.shape[0]
    assert T == 4, "this instantiation uses 4 flip TTAs (id, hflip, vflip, hvflip)"

    # ---- agg_model glue: softmax weights over the selected TTA indices ----
    if tta_idxs is None:
        mask = jnp.ones((T,), jnp.float32)
    else:
        tta_idxs = jnp.asarray(tta_idxs)
        assert tta_idxs.shape[0] > 0, "tta_idxs must select at least one view"
        mask = jnp.zeros((T,), jnp.float32).at[tta_idxs].set(1.0)
    masked = jnp.where(mask > 0, agg_logits.astype(jnp.float32), -jnp.inf)
    wts = jax.nn.softmax(masked)
    wts = jnp.where(mask > 0, wts, 0.0)  # (T,)

    # ---- fold flips + aggregation weights into one effective classifier ----
    # flip_t(x).flatten() @ W == x.flatten() @ flip_t(W viewed as (C, H, W, K)).
    # Fused sum of scaled flips (no (T,C,H,W,K) stack materialized in HBM).
    # NOTE: when w_cls / agg_logits / tta_idxs are static across calls, jit and
    # cache w_eff/b_eff outside the hot path to remove this stream entirely.
    w4 = w_cls.astype(jnp.float32).reshape(C, H, W, K)
    w_eff = (wts[0] * w4
             + wts[1] * jnp.flip(w4, axis=2)        # hflip of x (its W axis)
             + wts[2] * jnp.flip(w4, axis=1)        # vflip of x (its H axis)
             + wts[3] * jnp.flip(w4, axis=(1, 2))   # 180-degree rotation
             ).reshape(D, K)
    # Bias scaled by sum(wts) (== 1 for softmax over a non-empty selection).
    b_eff = b_cls.astype(jnp.float32) * jnp.sum(wts)

    # ---- lane padding for K: only when K >= 128 (small K keeps full extent) --
    if K % 128 == 0 or K < 128:
        Kp = K
    else:
        Kp = _round_up(K, 128)

    # ---- generation-aware VMEM limit -----------------------------------------
    try:
        vmem_cap = int(pltpu.get_tpu_info().vmem_capacity_bytes)
    except Exception:
        vmem_cap = 64 * 1024 * 1024  # conservative (v7x per-TC size)
    vmem_limit = int(min(max(vmem_cap - 16 * 1024 * 1024, 32 * 1024 * 1024),
                         96 * 1024 * 1024))

    # ---- tiling: cdiv grid + zero padding (exact for a dot) ------------------
    x_bytes = jnp.dtype(x.dtype).itemsize
    w_bytes = jnp.dtype(compute_dtype).itemsize

    # B tiles: up to 512 rows (cuts W_eff re-streaming per B tile); guarantee
    # >= 2 'parallel' B tiles when the batch allows so v7x's two TensorCores
    # (and both HBM paths) are both used.
    b8 = _round_up(B, 8)
    tb = min(512, b8)
    if b8 > 8 and b8 <= tb:
        tb = max(8, _round_up(b8 // 2, 8))
    Bp = _round_up(B, tb)

    # D tiles: as large as possible (fewer ~0.35us grid steps) subject to
    # <= ~8 MiB of x per buffer and the double-buffered step fitting VMEM.
    def _step_vmem(td_):
        return (2 * (tb * td_ * x_bytes + td_ * Kp * w_bytes)
                + 2 * tb * Kp * 4)

    td_cap = 8192
    while td_cap > 512 and (
            tb * td_cap * x_bytes > 8 * 1024 * 1024
            or _step_vmem(td_cap) > vmem_limit - 4 * 1024 * 1024):
        td_cap //= 2
    td = min(td_cap, _round_up(D, 128))
    Dp = _round_up(D, td)

    # ---- pad operands (zero padding is exact for the GEMM) -------------------
    x_flat = x.reshape(B, D)                      # stored dtype; cast in-kernel
    if Bp != B or Dp != D:
        x_flat = jnp.pad(x_flat, ((0, Bp - B), (0, Dp - D)))
    w_pad = jnp.pad(w_eff, ((0, Dp - D), (0, Kp - K))).astype(compute_dtype)
    b_pad = jnp.pad(b_eff, ((0, Kp - K),)).reshape(1, Kp).astype(jnp.float32)

    grid = (Bp // tb, Dp // td)

    cost = pl.CostEstimate(
        flops=2 * Bp * Dp * Kp,
        transcendentals=0,
        bytes_accessed=(Bp * Dp * x_bytes                    # x streamed once
                        + (Bp // tb) * Dp * Kp * w_bytes     # W per B tile
                        + Bp * Kp * 4 + Kp * 4),             # out + bias
    )

    out = pl.pallas_call(
        _agg_tta_gemm_kernel,
        out_shape=jax.ShapeDtypeStruct((Bp, Kp), jnp.float32),
        grid=grid,
        in_specs=[
            pl.BlockSpec((tb, td), lambda i, k: (i, k)),   # x tile
            pl.BlockSpec((td, Kp), lambda i, k: (k, 0)),   # W_eff tile
            pl.BlockSpec((1, Kp), lambda i, k: (0, 0)),    # bias
        ],
        out_specs=pl.BlockSpec((tb, Kp), lambda i, k: (i, 0)),
        compiler_params=pltpu.CompilerParams(
            dimension_semantics=("parallel", "arbitrary"),  # B parallel, D reduce
            vmem_limit_bytes=vmem_limit,
        ),
        cost_estimate=cost,
    )(x_flat, w_pad, b_pad)

    return out[:B, :K]


def agg_tta_reference(x, w_cls, b_cls, agg_logits, tta_idxs=None):
    """Plain-JAX reference implementing the original module literally
    (T flipped views -> linear backbone -> softmax-weighted aggregation)."""
    B, C, H, W = x.shape
    T = agg_logits.shape[0]
    views = jnp.stack(
        [x, jnp.flip(x, axis=3), jnp.flip(x, axis=2), jnp.flip(x, axis=(2, 3))],
        axis=0,
    ).reshape(T, B, C * H * W)
    if tta_idxs is None:
        mask = jnp.ones((T,), jnp.float32)
    else:
        mask = jnp.zeros((T,), jnp.float32).at[jnp.asarray(tta_idxs)].set(1.0)
    wts = jax.nn.softmax(jnp.where(mask > 0, agg_logits, -jnp.inf))
    wts = jnp.where(mask > 0, wts, 0.0)
    logits = jnp.einsum("tbd,dk->tbk", views, w_cls) + b_cls[None, None, :]
    return jnp.einsum("t,tbk->bk", wts, logits)


if __name__ == "__main__":
    key = jax.random.PRNGKey(0)
    k_x, k_w, k_b, k_a = jax.random.split(key, 4)

    # small shapes consistent with the module's forward
    B, C, H, W = 2, 4, 16, 16
    T, K = 4, 10
    D = C * H * W

    x = jax.random.normal(k_x, (B, C, H, W), jnp.float32)
    w_cls = jax.random.normal(k_w, (D, K), jnp.float32) * 0.02
    b_cls = jax.random.normal(k_b, (K,), jnp.float32) * 0.1
    agg_logits = jax.random.normal(k_a, (T,), jnp.float32)  # learned TTA weights
    tta_idxs = jnp.array([0, 2, 3], jnp.int32)              # subset of TTA views

    ref = agg_tta_reference(x, w_cls, b_cls, agg_logits, tta_idxs)

    # default path: bf16 weight/x compute stream, f32 accumulation
    out = jax.block_until_ready(
        agg_tta_forward(x, w_cls, b_cls, agg_logits, tta_idxs))
    assert out.shape == (B, K)
    assert jnp.allclose(out, ref, atol=1e-1, rtol=1e-1), (out, ref)

    # f32 compute path (exact vs. the module reference)
    out_f32 = jax.block_until_ready(
        agg_tta_forward(x, w_cls, b_cls, agg_logits, tta_idxs,
                        compute_dtype=jnp.float32))
    assert jnp.allclose(out_f32, ref, atol=1e-4, rtol=1e-4), (out_f32, ref)

    # all-views path (tta_idxs=None), f32 for an exact check
    out_all = jax.block_until_ready(
        agg_tta_forward(x, w_cls, b_cls, agg_logits,
                        compute_dtype=jnp.float32))
    ref_all = agg_tta_reference(x, w_cls, b_cls, agg_logits)
    assert jnp.allclose(out_all, ref_all, atol=1e-4, rtol=1e-4), (out_all, ref_all)

    print("KERNEL_OK")
</pallas_src>

<mosaic_0001>
module attributes {stable_mosaic.version = 11 : i64} {
  func.func @_agg_tta_gemm_kernel(%arg0: i32, %arg1: i32, %arg2: memref<8x1024xf32, #tpu.memory_space<vmem>>, %arg3: memref<1024x10xbf16, #tpu.memory_space<vmem>>, %arg4: memref<1x10xf32, #tpu.memory_space<vmem>>, %arg5: memref<8x10xf32, #tpu.memory_space<vmem>>) attributes {dimension_semantics = [#tpu.dimension_semantics<parallel>, #tpu.dimension_semantics<arbitrary>], iteration_bounds = array<i64: 1, 1>, scalar_prefetch = 0 : i64, scratch_operands = 0 : i64, tpu.core_type = #tpu.core_type<tc>, window_params = [{transform_indices = @transform_0, window_bounds = array<i64: 8, 1024>}, {transform_indices = @transform_1, window_bounds = array<i64: 1024, 10>}, {pipeline_mode = #tpu.pipeline_mode<synchronous>, transform_indices = @transform_2, window_bounds = array<i64: 1, 10>}, {transform_indices = @transform_3, window_bounds = array<i64: 8, 10>}]} {
    %c0_i32 = arith.constant 0 : i32
    %0 = arith.cmpi eq, %arg1, %c0_i32 : i32
    %1 = arith.extui %0 : i1 to i32
    %c0_i32_0 = arith.constant 0 : i32
    %2 = arith.cmpi ne, %1, %c0_i32_0 : i32
    scf.if %2 {
      %c0_8 = arith.constant 0 : index
      %c0_9 = arith.constant 0 : index
      %10 = vector.load %arg4[%c0_8, %c0_9] : memref<1x10xf32, #tpu.memory_space<vmem>>, vector<1x10xf32>
      %11 = vector.shape_cast %10 : vector<1x10xf32> to vector<1x10xf32>
      %12 = vector.broadcast %11 : vector<1x10xf32> to vector<8x10xf32>
      %c0_10 = arith.constant 0 : index
      %c0_11 = arith.constant 0 : index
      %13 = vector.load %arg5[%c0_10, %c0_11] : memref<8x10xf32, #tpu.memory_space<vmem>>, vector<8x10xf32>
      tpu.vector_store %arg5[%c0_10, %c0_11], %12 {strides = array<i32>} : memref<8x10xf32, #tpu.memory_space<vmem>>, vector<8x10xf32>,
    } else {
    }
    %c0 = arith.constant 0 : index
    %c0_1 = arith.constant 0 : index
    %3 = vector.load %arg5[%c0, %c0_1] : memref<8x10xf32, #tpu.memory_space<vmem>>, vector<8x10xf32>
    %c0_2 = arith.constant 0 : index
    %c0_3 = arith.constant 0 : index
    %4 = vector.load %arg2[%c0_2, %c0_3] : memref<8x1024xf32, #tpu.memory_space<vmem>>, vector<8x1024xf32>
    %5 = arith.truncf %4 : vector<8x1024xf32> to vector<8x1024xbf16>
    %c0_4 = arith.constant 0 : index
    %c0_5 = arith.constant 0 : index
    %6 = vector.load %arg3[%c0_4, %c0_5] : memref<1024x10xbf16, #tpu.memory_space<vmem>>, vector<1024x10xbf16>
    %cst = arith.constant dense<0.000000e+00> : vector<8x10xf32>
    %7 = tpu.matmul %5, %6, %cst {dimension_numbers = #tpu.dot_dimension_numbers<[1], [0], [0], [1], [0, 0, 1, 1], [], []>} : vector<8x1024xbf16>, vector<1024x10xbf16>, vector<8x10xf32> -> vector<8x10xf32>
    %8 = arith.addf %3, %7 : vector<8x10xf32>
    %c0_6 = arith.constant 0 : index
    %c0_7 = arith.constant 0 : index
    %9 = vector.load %arg5[%c0_6, %c0_7] : memref<8x10xf32, #tpu.memory_space<vmem>>, vector<8x10xf32>
    tpu.vector_store %arg5[%c0_6, %c0_7], %8 {strides = array<i32>} : memref<8x10xf32, #tpu.memory_space<vmem>>, vector<8x10xf32>,
    return
  }
  func.func @transform_0(%arg0: i32, %arg1: i32) -> (i32, i32) {
    %c0_i32 = arith.constant 0 : i32
    return %arg0, %arg1 : i32, i32
  }
  func.func @transform_1(%arg0: i32, %arg1: i32) -> (i32, i32) {
    %c0_i32 = arith.constant 0 : i32
    %c0_i32_0 = arith.constant 0 : i32
    return %arg1, %c0_i32 : i32, i32
  }
  func.func @transform_2(%arg0: i32, %arg1: i32) -> (i32, i32) {
    %c0_i32 = arith.constant 0 : i32
    %c0_i32_0 = arith.constant 0 : i32
    %c0_i32_1 = arith.constant 0 : i32
    return %c0_i32, %c0_i32_0 : i32, i32
  }
  func.func @transform_3(%arg0: i32, %arg1: i32) -> (i32, i32) {
    %c0_i32 = arith.constant 0 : i32
    %c0_i32_0 = arith.constant 0 : i32
    return %arg0, %c0_i32 : i32, i32
  }
}

</mosaic_0001>

<llo_original>
// kernel: tpu_custom_call.1
$region0: #{tpu_custom_call.1}
  #allocation0 [shape = 'u32[]', space=smem, size = 0x4, offset = 0x4, fixed_abs, tag = 'smem constant byte address 0x4 - core index']
  #allocation1 [shape = 'u32[72,128]{1,0:T(1,128)}', space=vmem, size = 0x9000, scoped, tag = 'internal scratch']
  %s0 = inlined_call_operand.vmem [shape: f32[8,1024], index: 0, kind: input, shape index: {}]
  %s1 = inlined_call_operand.vmem [shape: bf16[1024,10], index: 1, kind: input, shape index: {}]
  %s2 = inlined_call_operand.vmem [shape: f32[1,10], index: 2, kind: input, shape index: {}]
  %s3 = inlined_call_operand.hbm [shape: f32[8,10], index: 3, kind: output, shape index: {}]
  %s4 = sld [smem:[#allocation0]]
  $region26: #{tpu_custom_call.1} parent=0
    _
  %s6 = ssub.s32 1, %s4
  %s7 = scalar_select 0, %s6, %s4
  $region1: #{tpu_custom_call.1} parent=0
    #allocation2 [shape = 'u8[4096]{0}', space=vmem, size = 0x1000, scoped, tag = 'output window, operand 0, single buffered']
    #allocation3 [shape = 's32[1]{0}', space=sflag, size = 0x4, scoped, tag = 'scoped memory for tpu_custom_call.1']
    %8 = vsyncpa [#allocation3], 0
    // Predicated region
    $region2: #{tpu_custom_call.1} parent=1 // pred_check
      _
    $region3: #{tpu_custom_call.1} parent=1 // pred_check_branch
      %10 = sbr.rel (0) target = $region5
    $region4: #{tpu_custom_call.1} parent=1 // pred_region
      _
    $region5: #{tpu_custom_call.1} parent=1 // pred_fallthru
      _
    // Predicated region
    $region6: #{tpu_custom_call.1} parent=1 // pred_check
      _
    $region7: #{tpu_custom_call.1} parent=1 // pred_check_branch
      %12 = sbr.rel (0) target = $region9
    $region8: #{tpu_custom_call.1} parent=1 // pred_region
      _
    $region9: #{tpu_custom_call.1} parent=1 // pred_fallthru
      _
    // Predicated region
    $region10: #{tpu_custom_call.1} parent=1 // pred_check
      _
    $region11: #{tpu_custom_call.1} parent=1 // pred_check_branch
      %14 = sbr.rel (0) target = $region13
    $region12: #{tpu_custom_call.1} parent=1 // pred_region
      _
    $region13: #{tpu_custom_call.1} parent=1 // pred_fallthru
      _
    %p15 = scmp.eq.s32.totalorder 0, 0
    // Predicated region
    $region14: #{tpu_custom_call.1} parent=1 // pred_check
      %p16 = pneg %p15
    $region15: #{tpu_custom_call.1} parent=1 // pred_check_branch
      %18 = sbr.rel (%p16) target = $region17
    $region16: #{tpu_custom_call.1} parent=1 // pred_region
      %v19 = vld [vmem:[%s2] sm:$0x1]
      %v21 = vperm.slane %v19, 0
      %vm23 = vcmask 80896
      %24 = vst.msk [vmem:[#allocation2] sm:$0xff] %vm23, %v21
    $region17: #{tpu_custom_call.1} parent=1 // pred_fallthru
      _
    %v25 = vld [vmem:[#allocation2] sm:$0xff]
    %v26 = vld [vmem:[%s0] sm:$0xff]
    %v27 = vld [vmem:[%s0 + $0x8] sm:$0xff]
    %v28 = vld [vmem:[%s0 + $0x10] sm:$0xff]
    %v29 = vld [vmem:[%s0 + $0x18] sm:$0xff]
    %v30 = vld [vmem:[%s0 + $0x20] sm:$0xff]
    %v31 = vld [vmem:[%s0 + $0x28] sm:$0xff]
    %v32 = vld [vmem:[%s0 + $0x30] sm:$0xff]
    %v33 = vld [vmem:[%s0 + $0x38] sm:$0xff]
    %v34 = vpack.c.bf16 %v26, %v26
    %v35 = vpack.c.bf16 %v27, %v27
    %v36 = vpack.c.bf16 %v28, %v28
    %v37 = vpack.c.bf16 %v29, %v29
    %v38 = vpack.c.bf16 %v30, %v30
    %v39 = vpack.c.bf16 %v31, %v31
    %v40 = vpack.c.bf16 %v32, %v32
    %v41 = vpack.c.bf16 %v33, %v33
    %v42 = vld [vmem:[%s1] sm:$0xf]
    %v43 = vld [vmem:[%s1 + $0x4] sm:$0xf]
    %v44 = vld [vmem:[%s1 + $0x8] sm:$0xf]
    %v45 = vld [vmem:[%s1 + $0xc] sm:$0xf]
    %v46 = vld [vmem:[%s1 + $0x10] sm:$0xf]
    %v47 = vld [vmem:[%s1 + $0x14] sm:$0xf]
    %v48 = vld [vmem:[%s1 + $0x18] sm:$0xf]
    %v49 = vld [vmem:[%s1 + $0x1c] sm:$0xf]
    %v50 = vld [vmem:[%s1 + $0x20] sm:$0xf]
    %v51 = vld [vmem:[%s1 + $0x24] sm:$0xf]
    %v52 = vld [vmem:[%s1 + $0x28] sm:$0xf]
    %v53 = vld [vmem:[%s1 + $0x2c] sm:$0xf]
    %v54 = vld [vmem:[%s1 + $0x30] sm:$0xf]
    %v55 = vld [vmem:[%s1 + $0x34] sm:$0xf]
    %v56 = vld [vmem:[%s1 + $0x38] sm:$0xf]
    %v57 = vld [vmem:[%s1 + $0x3c] sm:$0xf]
    %v58 = vld [vmem:[%s1 + $0x40] sm:$0xf]
    %v59 = vld [vmem:[%s1 + $0x44] sm:$0xf]
    %v60 = vld [vmem:[%s1 + $0x48] sm:$0xf]
    %v61 = vld [vmem:[%s1 + $0x4c] sm:$0xf]
    %v62 = vld [vmem:[%s1 + $0x50] sm:$0xf]
    %v63 = vld [vmem:[%s1 + $0x54] sm:$0xf]
    %v64 = vld [vmem:[%s1 + $0x58] sm:$0xf]
    %v65 = vld [vmem:[%s1 + $0x5c] sm:$0xf]
    %v66 = vld [vmem:[%s1 + $0x60] sm:$0xf]
    %v67 = vld [vmem:[%s1 + $0x64] sm:$0xf]
    %v68 = vld [vmem:[%s1 + $0x68] sm:$0xf]
    %v69 = vld [vmem:[%s1 + $0x6c] sm:$0xf]
    %v70 = vld [vmem:[%s1 + $0x70] sm:$0xf]
    %v71 = vld [vmem:[%s1 + $0x74] sm:$0xf]
    %v72 = vld [vmem:[%s1 + $0x78] sm:$0xf]
    %v73 = vld [vmem:[%s1 + $0x7c] sm:$0xf]
    %v74 = vld [vmem:[%s1 + $0x80] sm:$0xf]
    %v75 = vld [vmem:[%s1 + $0x84] sm:$0xf]
    %v76 = vld [vmem:[%s1 + $0x88] sm:$0xf]
    %v77 = vld [vmem:[%s1 + $0x8c] sm:$0xf]
    %v78 = vld [vmem:[%s1 + $0x90] sm:$0xf]
    %v79 = vld [vmem:[%s1 + $0x94] sm:$0xf]
    %v80 = vld [vmem:[%s1 + $0x98] sm:$0xf]
    %v81 = vld [vmem:[%s1 + $0x9c] sm:$0xf]
    %v82 = vld [vmem:[%s1 + $0xa0] sm:$0xf]
    %v83 = vld [vmem:[%s1 + $0xa4] sm:$0xf]
    %v84 = vld [vmem:[%s1 + $0xa8] sm:$0xf]
    %v85 = vld [vmem:[%s1 + $0xac] sm:$0xf]
    %v86 = vld [vmem:[%s1 + $0xb0] sm:$0xf]
    %v87 = vld [vmem:[%s1 + $0xb4] sm:$0xf]
    %v88 = vld [vmem:[%s1 + $0xb8] sm:$0xf]
    %v89 = vld [vmem:[%s1 + $0xbc] sm:$0xf]
    %v90 = vld [vmem:[%s1 + $0xc0] sm:$0xf]
    %v91 = vld [vmem:[%s1 + $0xc4] sm:$0xf]
    %v92 = vld [vmem:[%s1 + $0xc8] sm:$0xf]
    %v93 = vld [vmem:[%s1 + $0xcc] sm:$0xf]
    %v94 = vld [vmem:[%s1 + $0xd0] sm:$0xf]
    %v95 = vld [vmem:[%s1 + $0xd4] sm:$0xf]
    %v96 = vld [vmem:[%s1 + $0xd8] sm:$0xf]
    %v97 = vld [vmem:[%s1 + $0xdc] sm:$0xf]
    %v98 = vld [vmem:[%s1 + $0xe0] sm:$0xf]
    %v99 = vld [vmem:[%s1 + $0xe4] sm:$0xf]
    %v100 = vld [vmem:[%s1 + $0xe8] sm:$0xf]
    %v101 = vld [vmem:[%s1 + $0xec] sm:$0xf]
    %v102 = vld [vmem:[%s1 + $0xf0] sm:$0xf]
    %v103 = vld [vmem:[%s1 + $0xf4] sm:$0xf]
    %v104 = vld [vmem:[%s1 + $0xf8] sm:$0xf]
    %v105 = vld [vmem:[%s1 + $0xfc] sm:$0xf]
    %v106 = vld [vmem:[%s1 + $0x100] sm:$0xf]
    %v107 = vld [vmem:[%s1 + $0x104] sm:$0xf]
    %v108 = vld [vmem:[%s1 + $0x108] sm:$0xf]
    %v109 = vld [vmem:[%s1 + $0x10c] sm:$0xf]
    %v110 = vld [vmem:[%s1 + $0x110] sm:$0xf]
    %v111 = vld [vmem:[%s1 + $0x114] sm:$0xf]
    %v112 = vld [vmem:[%s1 + $0x118] sm:$0xf]
    %v113 = vld [vmem:[%s1 + $0x11c] sm:$0xf]
    %v114 = vld [vmem:[%s1 + $0x120] sm:$0xf]
    %v115 = vld [vmem:[%s1 + $0x124] sm:$0xf]
    %v116 = vld [vmem:[%s1 + $0x128] sm:$0xf]
    %v117 = vld [vmem:[%s1 + $0x12c] sm:$0xf]
    %v118 = vld [vmem:[%s1 + $0x130] sm:$0xf]
    %v119 = vld [vmem:[%s1 + $0x134] sm:$0xf]
    %v120 = vld [vmem:[%s1 + $0x138] sm:$0xf]
    %v121 = vld [vmem:[%s1 + $0x13c] sm:$0xf]
    %v122 = vld [vmem:[%s1 + $0x140] sm:$0xf]
    %v123 = vld [vmem:[%s1 + $0x144] sm:$0xf]
    %v124 = vld [vmem:[%s1 + $0x148] sm:$0xf]
    %v125 = vld [vmem:[%s1 + $0x14c] sm:$0xf]
    %v126 = vld [vmem:[%s1 + $0x150] sm:$0xf]
    %v127 = vld [vmem:[%s1 + $0x154] sm:$0xf]
    %v128 = vld [vmem:[%s1 + $0x158] sm:$0xf]
    %v129 = vld [vmem:[%s1 + $0x15c] sm:$0xf]
    %v130 = vld [vmem:[%s1 + $0x160] sm:$0xf]
    %v131 = vld [vmem:[%s1 + $0x164] sm:$0xf]
    %v132 = vld [vmem:[%s1 + $0x168] sm:$0xf]
    %v133 = vld [vmem:[%s1 + $0x16c] sm:$0xf]
    %v134 = vld [vmem:[%s1 + $0x170] sm:$0xf]
    %v135 = vld [vmem:[%s1 + $0x174] sm:$0xf]
    %v136 = vld [vmem:[%s1 + $0x178] sm:$0xf]
    %v137 = vld [vmem:[%s1 + $0x17c] sm:$0xf]
    %v138 = vld [vmem:[%s1 + $0x180] sm:$0xf]
    %v139 = vld [vmem:[%s1 + $0x184] sm:$0xf]
    %v140 = vld [vmem:[%s1 + $0x188] sm:$0xf]
    %v141 = vld [vmem:[%s1 + $0x18c] sm:$0xf]
    %v142 = vld [vmem:[%s1 + $0x190] sm:$0xf]
    %v143 = vld [vmem:[%s1 + $0x194] sm:$0xf]
    %v144 = vld [vmem:[%s1 + $0x198] sm:$0xf]
    %v145 = vld [vmem:[%s1 + $0x19c] sm:$0xf]
    %v146 = vld [vmem:[%s1 + $0x1a0] sm:$0xf]
    %v147 = vld [vmem:[%s1 + $0x1a4] sm:$0xf]
    %v148 = vld [vmem:[%s1 + $0x1a8] sm:$0xf]
    %v149 = vld [vmem:[%s1 + $0x1ac] sm:$0xf]
    %v150 = vld [vmem:[%s1 + $0x1b0] sm:$0xf]
    %v151 = vld [vmem:[%s1 + $0x1b4] sm:$0xf]
    %v152 = vld [vmem:[%s1 + $0x1b8] sm:$0xf]
    %v153 = vld [vmem:[%s1 + $0x1bc] sm:$0xf]
    %v154 = vld [vmem:[%s1 + $0x1c0] sm:$0xf]
    %v155 = vld [vmem:[%s1 + $0x1c4] sm:$0xf]
    %v156 = vld [vmem:[%s1 + $0x1c8] sm:$0xf]
    %v157 = vld [vmem:[%s1 + $0x1cc] sm:$0xf]
    %v158 = vld [vmem:[%s1 + $0x1d0] sm:$0xf]
    %v159 = vld [vmem:[%s1 + $0x1d4] sm:$0xf]
    %v160 = vld [vmem:[%s1 + $0x1d8] sm:$0xf]
    %v161 = vld [vmem:[%s1 + $0x1dc] sm:$0xf]
    %v162 = vld [vmem:[%s1 + $0x1e0] sm:$0xf]
    %v163 = vld [vmem:[%s1 + $0x1e4] sm:$0xf]
    %v164 = vld [vmem:[%s1 + $0x1e8] sm:$0xf]
    %v165 = vld [vmem:[%s1 + $0x1ec] sm:$0xf]
    %v166 = vld [vmem:[%s1 + $0x1f0] sm:$0xf]
    %v167 = vld [vmem:[%s1 + $0x1f4] sm:$0xf]
    %v168 = vld [vmem:[%s1 + $0x1f8] sm:$0xf]
    %v169 = vld [vmem:[%s1 + $0x1fc] sm:$0xf]
    %v298 = vunpack.c.l.b16 %v42
    %v299 = vunpack.c.l.b16 %v43
    %v300 = vunpack.c.l.b16 %v44
    %v301 = vunpack.c.l.b16 %v45
    %v302 = vunpack.c.l.b16 %v46
    %v303 = vunpack.c.l.b16 %v47
    %v304 = vunpack.c.l.b16 %v48
    %v305 = vunpack.c.l.b16 %v49
    %v306 = vunpack.c.l.b16 %v50
    %v307 = vunpack.c.l.b16 %v51
    %v308 = vunpack.c.l.b16 %v52
    %v309 = vunpack.c.l.b16 %v53
    %v310 = vunpack.c.l.b16 %v54
    %v311 = vunpack.c.l.b16 %v55
    %v312 = vunpack.c.l.b16 %v56
    %v313 = vunpack.c.l.b16 %v57
    %v314 = vunpack.c.l.b16 %v58
    %v315 = vunpack.c.l.b16 %v59
    %v316 = vunpack.c.l.b16 %v60
    %v317 = vunpack.c.l.b16 %v61
    %v318 = vunpack.c.l.b16 %v62
    %v319 = vunpack.c.l.b16 %v63
    %v320 = vunpack.c.l.b16 %v64
    %v321 = vunpack.c.l.b16 %v65
    %v322 = vunpack.c.l.b16 %v66
    %v323 = vunpack.c.l.b16 %v67
    %v324 = vunpack.c.l.b16 %v68
    %v325 = vunpack.c.l.b16 %v69
    %v326 = vunpack.c.l.b16 %v70
    %v327 = vunpack.c.l.b16 %v71
    %v328 = vunpack.c.l.b16 %v72
    %v329 = vunpack.c.l.b16 %v73
    %v330 = vunpack.c.l.b16 %v74
    %v331 = vunpack.c.l.b16 %v75
    %v332 = vunpack.c.l.b16 %v76
    %v333 = vunpack.c.l.b16 %v77
    %v334 = vunpack.c.l.b16 %v78
    %v335 = vunpack.c.l.b16 %v79
    %v336 = vunpack.c.l.b16 %v80
    %v337 = vunpack.c.l.b16 %v81
    %v338 = vunpack.c.l.b16 %v82
    %v339 = vunpack.c.l.b16 %v83
    %v340 = vunpack.c.l.b16 %v84
    %v341 = vunpack.c.l.b16 %v85
    %v342 = vunpack.c.l.b16 %v86
    %v343 = vunpack.c.l.b16 %v87
    %v344 = vunpack.c.l.b16 %v88
    %v345 = vunpack.c.l.b16 %v89
    %v346 = vunpack.c.l.b16 %v90
    %v347 = vunpack.c.l.b16 %v91
    %v348 = vunpack.c.l.b16 %v92
    %v349 = vunpack.c.l.b16 %v93
    %v350 = vunpack.c.l.b16 %v94
    %v351 = vunpack.c.l.b16 %v95
    %v352 = vunpack.c.l.b16 %v96
    %v353 = vunpack.c.l.b16 %v97
    %v354 = vunpack.c.l.b16 %v98
    %v355 = vunpack.c.l.b16 %v99
    %v356 = vunpack.c.l.b16 %v100
    %v357 = vunpack.c.l.b16 %v101
    %v358 = vunpack.c.l.b16 %v102
    %v359 = vunpack.c.l.b16 %v103
    %v360 = vunpack.c.l.b16 %v104
    %v361 = vunpack.c.l.b16 %v105
    %v362 = vunpack.c.l.b16 %v106
    %v363 = vunpack.c.l.b16 %v107
    %v364 = vunpack.c.l.b16 %v108
    %v365 = vunpack.c.l.b16 %v109
    %v366 = vunpack.c.l.b16 %v110
    %v367 = vunpack.c.l.b16 %v111
    %v368 = vunpack.c.l.b16 %v112
    %v369 = vunpack.c.l.b16 %v113
    %v370 = vunpack.c.l.b16 %v114
    %v371 = vunpack.c.l.b16 %v115
    %v372 = vunpack.c.l.b16 %v116
    %v373 = vunpack.c.l.b16 %v117
    %v374 = vunpack.c.l.b16 %v118
    %v375 = vunpack.c.l.b16 %v119
    %v376 = vunpack.c.l.b16 %v120
    %v377 = vunpack.c.l.b16 %v121
    %v378 = vunpack.c.l.b16 %v122
    %v379 = vunpack.c.l.b16 %v123
    %v380 = vunpack.c.l.b16 %v124
    %v381 = vunpack.c.l.b16 %v125
    %v382 = vunpack.c.l.b16 %v126
    %v383 = vunpack.c.l.b16 %v127
    %v384 = vunpack.c.l.b16 %v128
    %v385 = vunpack.c.l.b16 %v129
    %v386 = vunpack.c.l.b16 %v130
    %v387 = vunpack.c.l.b16 %v131
    %v388 = vunpack.c.l.b16 %v132
    %v389 = vunpack.c.l.b16 %v133
    %v390 = vunpack.c.l.b16 %v134
    %v391 = vunpack.c.l.b16 %v135
    %v392 = vunpack.c.l.b16 %v136
    %v393 = vunpack.c.l.b16 %v137
    %v394 = vunpack.c.l.b16 %v138
    %v395 = vunpack.c.l.b16 %v139
    %v396 = vunpack.c.l.b16 %v140
    %v397 = vunpack.c.l.b16 %v141
    %v398 = vunpack.c.l.b16 %v142
    %v399 = vunpack.c.l.b16 %v143
    %v400 = vunpack.c.l.b16 %v144
    %v401 = vunpack.c.l.b16 %v145
    %v402 = vunpack.c.l.b16 %v146
    %v403 = vunpack.c.l.b16 %v147
    %v404 = vunpack.c.l.b16 %v148
    %v405 = vunpack.c.l.b16 %v149
    %v406 = vunpack.c.l.b16 %v150
    %v407 = vunpack.c.l.b16 %v151
    %v408 = vunpack.c.l.b16 %v152
    %v409 = vunpack.c.l.b16 %v153
    %v410 = vunpack.c.l.b16 %v154
    %v411 = vunpack.c.l.b16 %v155
    %v412 = vunpack.c.l.b16 %v156
    %v413 = vunpack.c.l.b16 %v157
    %v414 = vunpack.c.l.b16 %v158
    %v415 = vunpack.c.l.b16 %v159
    %v416 = vunpack.c.l.b16 %v160
    %v417 = vunpack.c.l.b16 %v161
    %v418 = vunpack.c.l.b16 %v162
    %v419 = vunpack.c.l.b16 %v163
    %v420 = vunpack.c.l.b16 %v164
    %v421 = vunpack.c.l.b16 %v165
    %v422 = vunpack.c.l.b16 %v166
    %v423 = vunpack.c.l.b16 %v167
    %v424 = vunpack.c.l.b16 %v168
    %v425 = vunpack.c.l.b16 %v169
    %v426 = vpack.c.b16 %v299, %v298
    %v427 = vpack.c.b16 %v301, %v300
    %v428 = vpack.c.b16 %v303, %v302
    %v429 = vpack.c.b16 %v305, %v304
    %v430 = vpack.c.b16 %v307, %v306
    %v431 = vpack.c.b16 %v309, %v308
    %v432 = vpack.c.b16 %v311, %v310
    %v433 = vpack.c.b16 %v313, %v312
    %v434 = vpack.c.b16 %v315, %v314
    %v435 = vpack.c.b16 %v317, %v316
    %v436 = vpack.c.b16 %v319, %v318
    %v437 = vpack.c.b16 %v321, %v320
    %v438 = vpack.c.b16 %v323, %v322
    %v439 = vpack.c.b16 %v325, %v324
    %v440 = vpack.c.b16 %v327, %v326
    %v441 = vpack.c.b16 %v329, %v328
    %v442 = vpack.c.b16 %v331, %v330
    %v443 = vpack.c.b16 %v333, %v332
    %v444 = vpack.c.b16 %v335, %v334
    %v445 = vpack.c.b16 %v337, %v336
    %v446 = vpack.c.b16 %v339, %v338
    %v447 = vpack.c.b16 %v341, %v340
    %v448 = vpack.c.b16 %v343, %v342
    %v449 = vpack.c.b16 %v345, %v344
    %v450 = vpack.c.b16 %v347, %v346
    %v451 = vpack.c.b16 %v349, %v348
    %v452 = vpack.c.b16 %v351, %v350
    %v453 = vpack.c.b16 %v353, %v352
    %v454 = vpack.c.b16 %v355, %v354
    %v455 = vpack.c.b16 %v357, %v356
    %v456 = vpack.c.b16 %v359, %v358
    %v457 = vpack.c.b16 %v361, %v360
    %v458 = vpack.c.b16 %v363, %v362
    %v459 = vpack.c.b16 %v365, %v364
    %v460 = vpack.c.b16 %v367, %v366
    %v461 = vpack.c.b16 %v369, %v368
    %v462 = vpack.c.b16 %v371, %v370
    %v463 = vpack.c.b16 %v373, %v372
    %v464 = vpack.c.b16 %v375, %v374
    %v465 = vpack.c.b16 %v377, %v376
    %v466 = vpack.c.b16 %v379, %v378
    %v467 = vpack.c.b16 %v381, %v380
    %v468 = vpack.c.b16 %v383, %v382
    %v469 = vpack.c.b16 %v385, %v384
    %v470 = vpack.c.b16 %v387, %v386
    %v471 = vpack.c.b16 %v389, %v388
    %v472 = vpack.c.b16 %v391, %v390
    %v473 = vpack.c.b16 %v393, %v392
    %v474 = vpack.c.b16 %v395, %v394
    %v475 = vpack.c.b16 %v397, %v396
    %v476 = vpack.c.b16 %v399, %v398
    %v477 = vpack.c.b16 %v401, %v400
    %v478 = vpack.c.b16 %v403, %v402
    %v479 = vpack.c.b16 %v405, %v404
    %v480 = vpack.c.b16 %v407, %v406
    %v481 = vpack.c.b16 %v409, %v408
    %v482 = vpack.c.b16 %v411, %v410
    %v483 = vpack.c.b16 %v413, %v412
    %v484 = vpack.c.b16 %v415, %v414
    %v485 = vpack.c.b16 %v417, %v416
    %v486 = vpack.c.b16 %v419, %v418
    %v487 = vpack.c.b16 %v421, %v420
    %v488 = vpack.c.b16 %v423, %v422
    %v489 = vpack.c.b16 %v425, %v424
    %554 = vmatpush.bf16.msra.mxu0 %v433
    %555 = vmatpush.bf16.msra.mxu0 %v432
    %556 = vmatpush.bf16.msra.mxu0 %v431
    %557 = vmatpush.bf16.msra.mxu0 %v430
    %558 = vmatpush.bf16.msra.mxu0 %v429
    %559 = vmatpush.bf16.msra.mxu0 %v428
    %560 = vmatpush.bf16.msra.mxu0 %v427
    %561 = vmatpush.bf16.msra.mxu0 %v426
    %562 = vmatmul.bf16.gmra.mxu0 %v34
    %v563 = vpop.f32.mrf.mxu0
    %v564 = vadd.f32 0.0, %v563
    %v565 = vpop.f32.mrf.mxu0
    %566 = vdwg.mxu0
    %567 = vmatpush.bf16.msra.mxu0 %v441
    %568 = vmatpush.bf16.msra.mxu0 %v440
    %569 = vmatpush.bf16.msra.mxu0 %v439
    %570 = vmatpush.bf16.msra.mxu0 %v438
    %571 = vmatpush.bf16.msra.mxu0 %v437
    %572 = vmatpush.bf16.msra.mxu0 %v436
    %573 = vmatpush.bf16.msra.mxu0 %v435
    %574 = vmatpush.bf16.msra.mxu0 %v434
    %575 = vmatmul.bf16.gmra.mxu0 %v35
    %v576 = vpop.f32.mrf.mxu0
    %v577 = vadd.f32 %v564, %v576
    %v578 = vpop.f32.mrf.mxu0
    %579 = vdwg.mxu0
    %580 = vmatpush.bf16.msra.mxu0 %v449
    %581 = vmatpush.bf16.msra.mxu0 %v448
    %582 = vmatpush.bf16.msra.mxu0 %v447
    %583 = vmatpush.bf16.msra.mxu0 %v446
    %584 = vmatpush.bf16.msra.mxu0 %v445
    %585 = vmatpush.bf16.msra.mxu0 %v444
    %586 = vmatpush.bf16.msra.mxu0 %v443
    %587 = vmatpush.bf16.msra.mxu0 %v442
    %588 = vmatmul.bf16.gmra.mxu0 %v36
    %v589 = vpop.f32.mrf.mxu0
    %v590 = vadd.f32 %v577, %v589
    %v591 = vpop.f32.mrf.mxu0
    %592 = vdwg.mxu0
    %593 = vmatpush.bf16.msra.mxu0 %v457
    %594 = vmatpush.bf16.msra.mxu0 %v456
    %595 = vmatpush.bf16.msra.mxu0 %v455
    %596 = vmatpush.bf16.msra.mxu0 %v454
    %597 = vmatpush.bf16.msra.mxu0 %v453
    %598 = vmatpush.bf16.msra.mxu0 %v452
    %599 = vmatpush.bf16.msra.mxu0 %v451
    %600 = vmatpush.bf16.msra.mxu0 %v450
    %601 = vmatmul.bf16.gmra.mxu0 %v37
    %v602 = vpop.f32.mrf.mxu0
    %v603 = vadd.f32 %v590, %v602
    %v604 = vpop.f32.mrf.mxu0
    %605 = vdwg.mxu0
    %606 = vmatpush.bf16.msra.mxu0 %v465
    %607 = vmatpush.bf16.msra.mxu0 %v464
    %608 = vmatpush.bf16.msra.mxu0 %v463
    %609 = vmatpush.bf16.msra.mxu0 %v462
    %610 = vmatpush.bf16.msra.mxu0 %v461
    %611 = vmatpush.bf16.msra.mxu0 %v460
    %612 = vmatpush.bf16.msra.mxu0 %v459
    %613 = vmatpush.bf16.msra.mxu0 %v458
    %614 = vmatmul.bf16.gmra.mxu0 %v38
    %v615 = vpop.f32.mrf.mxu0
    %v616 = vadd.f32 %v603, %v615
    %v617 = vpop.f32.mrf.mxu0
    %618 = vdwg.mxu0
    %619 = vmatpush.bf16.msra.mxu0 %v473
    %620 = vmatpush.bf16.msra.mxu0 %v472
    %621 = vmatpush.bf16.msra.mxu0 %v471
    %622 = vmatpush.bf16.msra.mxu0 %v470
    %623 = vmatpush.bf16.msra.mxu0 %v469
    %624 = vmatpush.bf16.msra.mxu0 %v468
    %625 = vmatpush.bf16.msra.mxu0 %v467
    %626 = vmatpush.bf16.msra.mxu0 %v466
    %627 = vmatmul.bf16.gmra.mxu0 %v39
    %v628 = vpop.f32.mrf.mxu0
    %v629 = vadd.f32 %v616, %v628
    %v630 = vpop.f32.mrf.mxu0
    %631 = vdwg.mxu0
    %632 = vmatpush.bf16.msra.mxu0 %v481
    %633 = vmatpush.bf16.msra.mxu0 %v480
    %634 = vmatpush.bf16.msra.mxu0 %v479
    %635 = vmatpush.bf16.msra.mxu0 %v478
    %636 = vmatpush.bf16.msra.mxu0 %v477
    %637 = vmatpush.bf16.msra.mxu0 %v476
    %638 = vmatpush.bf16.msra.mxu0 %v475
    %639 = vmatpush.bf16.msra.mxu0 %v474
    %640 = vmatmul.bf16.gmra.mxu0 %v40
    %v641 = vpop.f32.mrf.mxu0
    %v642 = vadd.f32 %v629, %v641
    %v643 = vpop.f32.mrf.mxu0
    %644 = vdwg.mxu0
    %645 = vmatpush.bf16.msra.mxu0 %v489
    %646 = vmatpush.bf16.msra.mxu0 %v488
    %647 = vmatpush.bf16.msra.mxu0 %v487
    %648 = vmatpush.bf16.msra.mxu0 %v486
    %649 = vmatpush.bf16.msra.mxu0 %v485
    %650 = vmatpush.bf16.msra.mxu0 %v484
    %651 = vmatpush.bf16.msra.mxu0 %v483
    %652 = vmatpush.bf16.msra.mxu0 %v482
    %653 = vmatmul.bf16.gmra.mxu0 %v41
    %v654 = vpop.f32.mrf.mxu0
    %v655 = vadd.f32 %v642, %v654
    %v656 = vpop.f32.mrf.mxu0
    %657 = vdwg.mxu0
    %v658 = vadd.f32 %v25, %v655
    %vm659 = vcmask 80896
    %660 = vst.msk [vmem:[#allocation2] sm:$0xff] %vm659, %v658
    // Predicated region
    $region18: #{tpu_custom_call.1} parent=1 // pred_check
      _
    $region19: #{tpu_custom_call.1} parent=1 // pred_check_branch
      %662 = sbr.rel (0) target = $region21
    $region20: #{tpu_custom_call.1} parent=1 // pred_region
      %664 = vsyncadd [#allocation3], 0
      %s666 = sshll.u32 [#allocation2], 4
      %s667 = int_to_ptr.vmem [resolvable:$true] %s666
      %s668 = sshll.u32 %s3, 4
      %s669 = int_to_ptr.hbm [resolvable:$true] %s668
      %671 = dma.vmem_to_hbm [thread:$0]  %s667, 128, %s669, [#allocation3]
    $region21: #{tpu_custom_call.1} parent=1 // pred_fallthru
      _
    // Predicated region
    $region22: #{tpu_custom_call.1} parent=1 // pred_check
      _
    $region23: #{tpu_custom_call.1} parent=1 // pred_check_branch
      %673 = sbr.rel (0) target = $region25
    $region24: #{tpu_custom_call.1} parent=1 // pred_region
      %675 = dma.done [#allocation3], 128
    $region25: #{tpu_custom_call.1} parent=1 // pred_fallthru
      _
    %676 = vsyncpa [#allocation3], 1

</llo_original>
